<compile_context>
chip_gen: v6e
topology: v6e:2x2x1
jax: 0.10.0
libtpu: 0.0.40
codegen_flags: <defaults>
</compile_context>

<pallas_src>
import numpy as np
import jax
import jax.numpy as jnp
from jax.experimental import pallas as pl
from jax.experimental.pallas import tpu as pltpu


# --------------------------------------------------------------------------
# Trace-time weight packing: 3x3 HWIO conv -> per-kh row-Toeplitz slabs
# --------------------------------------------------------------------------
def _build_row_toeplitz(w_hwio, W, scale=None, col_perm=None):
    """Pack (3,3,Cin,Cout) weights into bw of shape (KH, W*Cin, W*Cout).

    For a row-padded activation Xpad (rows 0 / last are zero, lane = w*Cin+ci),
    the padding=1 conv output in layout (rows, W*Cout) is
        sum_kh  Xpad[kh : kh + rows, :] @ bw[kh].
    Left/right spatial padding is absorbed by dropping out-of-range taps.
    `scale` (per-Cout, the folded BN scale) is baked into the output columns.
    `col_perm` permutes output spatial positions (even-w first) so the 2x2
    max-pool's horizontal half becomes a contiguous lane-slice max.
    """
    KH, KW, Cin, Cout = w_hwio.shape
    if scale is not None:
        w_hwio = w_hwio * scale[None, None, None, :]
    pad = (KW - 1) // 2
    T = np.zeros((KW, W, W), np.float32)        # T[kw, wo, wi] = 1 iff wi = wo+kw-pad
    for kw in range(KW):
        for wo in range(W):
            wi = wo + kw - pad
            if 0 <= wi < W:
                T[kw, wo, wi] = 1.0
    # bw5[kh, wi, ci, wo, co] = w_hwio[kh, wi-wo+pad, ci, co] (0 outside taps)
    bw5 = jnp.einsum("kpr,hkio->hripo", jnp.asarray(T), w_hwio)
    if col_perm is not None:
        bw5 = bw5[:, :, :, col_perm, :]
    return bw5.reshape(KH, W * Cin, W * Cout)


# --------------------------------------------------------------------------
# Fused kernel: conv1 + BN + ReLU -> conv2 + BN + ReLU -> maxpool 2x2
# (NB images per grid step, stacked along the matmul M dimension)
# --------------------------------------------------------------------------
def _make_block_kernel(NB, H, W, Cin, C1, C2):
    Hp = H + 2                 # per-image padded height (1-row top/bottom halo)
    M = NB * Hp                # matmul M dim: all NB padded images stacked
    Ho, Wo = H // 2, W // 2
    Kin, K1, K2 = W * Cin, W * C1, W * C2
    n_pairs = M // 2           # vertical pool pairs (incl. 1 garbage pair/image)
    ppi = Hp // 2              # pairs per image = Ho + 1

    def zero_halo_rows(ref, ncols):
        # Rows that must be zero so the Toeplitz dots see zero top/bottom padding:
        #   row 0                        (top halo of image 0)
        #   rows (n+1)*Hp-1, (n+1)*Hp    (bottom halo of image n / top halo of n+1)
        #   rows M-1, M, M+1             (last bottom halo + guard rows)
        z1 = jnp.zeros((1, ncols), jnp.float32)
        z2 = jnp.zeros((2, ncols), jnp.float32)
        z3 = jnp.zeros((3, ncols), jnp.float32)
        ref[0:1, :] = z1
        for n in range(NB - 1):
            ref[(n + 1) * Hp - 1:(n + 1) * Hp + 1, :] = z2
        ref[M - 1:M + 2, :] = z3

    def conv3x3(pad_ref, bw_ref):
        # padding=1 3x3 conv over all NB stacked images as 3 deep-K bf16 MXU dots.
        a0 = pad_ref[0:M, :].astype(jnp.bfloat16)
        a1 = pad_ref[1:M + 1, :].astype(jnp.bfloat16)
        a2 = pad_ref[2:M + 2, :].astype(jnp.bfloat16)
        acc = jnp.dot(a0, bw_ref[0], preferred_element_type=jnp.float32)
        acc = acc + jnp.dot(a1, bw_ref[1], preferred_element_type=jnp.float32)
        acc = acc + jnp.dot(a2, bw_ref[2], preferred_element_type=jnp.float32)
        return acc

    def kernel(x_ref, bw1_ref, b1_ref, bw2_ref, b2_ref, o_ref,
               pad1_ref, pad2_ref, y2_ref):
        # ---- build halo'd conv1 input slab: NB images stacked along sublanes ----
        for n in range(NB):
            pad1_ref[n * Hp + 1:n * Hp + 1 + H, :] = x_ref[n]
        zero_halo_rows(pad1_ref, Kin)

        # ---- conv1 (+ folded BN scale in bw1) + bias + ReLU ------------------
        acc1 = conv3x3(pad1_ref, bw1_ref)
        y1 = jnp.maximum(acc1 + b1_ref[...], 0.0)            # (M, K1) f32

        # ---- conv1 output -> halo'd conv2 input slab (stays in VMEM) ---------
        # y1 row m holds image m//Hp, output row m%Hp (rows H, H+1 per image are
        # garbage); shifting down by one row gives the padded layout, then the
        # halo rows (which the garbage rows landed on) are re-zeroed.
        pad2_ref[1:M + 1, :] = y1
        zero_halo_rows(pad2_ref, K1)

        # ---- conv2 (+ folded BN scale) + bias + ReLU -------------------------
        acc2 = conv3x3(pad2_ref, bw2_ref)
        y2_ref[...] = jnp.maximum(acc2 + b2_ref[...], 0.0)    # (M, K2) f32

        # ---- fused 2x2 max-pool, vectorized over all NB images ---------------
        # vertical: even/odd sublane pairs via two strided loads;
        # horizontal: conv2 columns are permuted [even w | odd w] (baked into
        # bw2), so the horizontal max is a contiguous lane-half max.
        va = y2_ref[pl.ds(0, n_pairs, stride=2), :]
        vb = y2_ref[pl.ds(1, n_pairs, stride=2), :]
        vmax = jnp.maximum(va, vb)                            # (n_pairs, K2)
        pooled = jnp.maximum(vmax[:, :Wo * C2], vmax[:, Wo * C2:])
        # per image, the first Ho of its (Ho+1) pooled pairs are valid
        for n in range(NB):
            o_ref[n] = pooled[n * ppi:n * ppi + Ho, :]

    return kernel


def _block_pallas(x_rows, bw1, b1, bw2, b2, *, NB, H, W, Cin, C1, C2):
    N_pad = x_rows.shape[0]
    G = N_pad // NB
    Hp, Ho, Wo = H + 2, H // 2, W // 2
    M = NB * Hp
    kernel = _make_block_kernel(NB, H, W, Cin, C1, C2)
    return pl.pallas_call(
        kernel,
        out_shape=jax.ShapeDtypeStruct((N_pad, Ho, Wo * C2), jnp.float32),
        grid=(G,),
        in_specs=[
            pl.BlockSpec((NB, H, W * Cin), lambda g: (g, 0, 0)),      # input rows
            pl.BlockSpec((3, W * Cin, W * C1), lambda g: (0, 0, 0)),  # bw1 (bf16)
            pl.BlockSpec((1, W * C1), lambda g: (0, 0)),              # bias1
            pl.BlockSpec((3, W * C1, W * C2), lambda g: (0, 0, 0)),   # bw2 (bf16)
            pl.BlockSpec((1, W * C2), lambda g: (0, 0)),              # bias2
        ],
        out_specs=pl.BlockSpec((NB, Ho, Wo * C2), lambda g: (g, 0, 0)),
        scratch_shapes=[
            pltpu.VMEM((M + 2, W * Cin), jnp.float32),   # halo'd conv1 input slab
            pltpu.VMEM((M + 2, W * C1), jnp.float32),    # halo'd conv2 input slab
            pltpu.VMEM((M, W * C2), jnp.float32),        # conv2 output (pool staging)
        ],
        compiler_params=pltpu.CompilerParams(
            dimension_semantics=("parallel",),
            vmem_limit_bytes=32 * 1024 * 1024,
        ),
    )(x_rows, bw1, b1, bw2, b2)


# --------------------------------------------------------------------------
# Public forward (PyTorch-style NCHW in / NCHW out)
# --------------------------------------------------------------------------
@jax.jit
def block_forward(x_nchw, p1, p2):
    N, Cin, H, W = x_nchw.shape
    C1 = p1["w"].shape[-1]
    C2 = p2["w"].shape[-1]
    Hp, Ho, Wo = H + 2, H // 2, W // 2

    # Batch tile: stack NB images along the matmul M dim so each MXU dot sees
    # M = NB*(H+2) >= ~128 rows (fills the v5e MXU; bump TARGET_M to 256 on
    # v6e/v7x when batches are large).  At realistic batch sizes this also
    # leaves >= 2 grid steps for the two v7x TensorCores; for the tiny demo
    # batch NB is simply capped at N.
    TARGET_M = 128
    NB = max(1, min(N, -(-TARGET_M // Hp)))
    G = -(-N // NB)
    N_pad = G * NB

    # Pack conv weights into Toeplitz matmul slabs with the folded BN scale
    # baked into the output columns; ship them as bf16 for the MXU.
    bw1 = _build_row_toeplitz(p1["w"], W, scale=p1["scale"]).astype(jnp.bfloat16)
    col_perm = np.concatenate([np.arange(0, W, 2), np.arange(1, W, 2)])
    bw2 = _build_row_toeplitz(p2["w"], W, scale=p2["scale"],
                              col_perm=col_perm).astype(jnp.bfloat16)

    # Folded BN bias, tiled across W so it broadcasts over the lane dim (it is
    # w-invariant, so bw2's even/odd column permutation does not affect it).
    b1 = jnp.tile(p1["bias"], W).reshape(1, W * C1)
    b2 = jnp.tile(p2["bias"], W).reshape(1, W * C2)

    # NCHW -> channels-last rows (N, H, W*Cin); lane index = w*Cin + c.
    x_rows = jnp.transpose(x_nchw, (0, 2, 3, 1)).reshape(N, H, W * Cin)
    if N_pad != N:
        x_rows = jnp.concatenate(
            [x_rows, jnp.zeros((N_pad - N, H, W * Cin), x_rows.dtype)], axis=0)

    out = _block_pallas(x_rows, bw1, b1, bw2, b2,
                        NB=NB, H=H, W=W, Cin=Cin, C1=C1, C2=C2)
    out = out[:N].reshape(N, Ho, Wo, C2)
    return jnp.transpose(out, (0, 3, 1, 2))      # -> NCHW


# --------------------------------------------------------------------------
# Parameter construction (deterministic, synthetic; eval-mode BN folded)
# --------------------------------------------------------------------------
def make_convbnrelu_params(key, cin, cout, eps=1e-5):
    k0, k1, k2, k3, k4, k5 = jax.random.split(key, 6)
    w = jax.random.normal(k0, (3, 3, cin, cout), jnp.float32) * 0.1   # HWIO
    conv_b = jax.random.normal(k1, (cout,), jnp.float32) * 0.05
    gamma = 1.0 + 0.1 * jax.random.normal(k2, (cout,), jnp.float32)
    beta = 0.1 * jax.random.normal(k3, (cout,), jnp.float32)
    run_mean = 0.05 * jax.random.normal(k4, (cout,), jnp.float32)
    run_var = 0.5 + jax.random.uniform(k5, (cout,), jnp.float32)
    scale = gamma / jnp.sqrt(run_var + eps)
    bias = (conv_b - run_mean) * scale + beta
    return {"w": w, "scale": scale, "bias": bias}


# --------------------------------------------------------------------------
# Pure-JAX reference (correctness check, f32 end to end)
# --------------------------------------------------------------------------
def ref_conv_bn_relu(x, w, scale, bias):
    y = jax.lax.conv_general_dilated(
        x, w, window_strides=(1, 1), padding=((1, 1), (1, 1)),
        dimension_numbers=("NHWC", "HWIO", "NHWC"),
    )
    return jnp.maximum(y * scale + bias, 0.0)


def ref_block(x_nchw, p1, p2):
    x = jnp.transpose(x_nchw, (0, 2, 3, 1))
    x = ref_conv_bn_relu(x, p1["w"], p1["scale"], p1["bias"])
    x = ref_conv_bn_relu(x, p2["w"], p2["scale"], p2["bias"])
    N, H, W, C = x.shape
    x = x.reshape(N, H // 2, 2, W // 2, 2, C).max(axis=(2, 4))
    return jnp.transpose(x, (0, 3, 1, 2))


if __name__ == "__main__":
    key = jax.random.PRNGKey(0)
    kx, kp1, kp2 = jax.random.split(key, 3)

    in_channels, out_channels = 4, 8
    x = jax.random.normal(kx, (2, in_channels, 16, 16), jnp.float32)  # NCHW

    p1 = make_convbnrelu_params(kp1, in_channels, out_channels)
    p2 = make_convbnrelu_params(kp2, out_channels, out_channels)

    out = jax.block_until_ready(block_forward(x, p1, p2))
    assert out.shape == (2, out_channels, 8, 8), out.shape

    ref = jax.block_until_ready(ref_block(x, p1, p2))
    # bf16 MXU operands (per perf review) vs the f32 reference -> slightly
    # looser tolerance than the all-f32 version.
    np.testing.assert_allclose(np.asarray(out), np.asarray(ref),
                               rtol=2e-2, atol=3e-2)
    print("KERNEL_OK")
</pallas_src>

<mosaic_0001>
module attributes {stable_mosaic.version = 11 : i64} {
  func.func @kernel(%arg0: i32, %arg1: memref<2x16x64xf32, #tpu.memory_space<vmem>>, %arg2: memref<3x64x128xbf16, #tpu.memory_space<vmem>>, %arg3: memref<1x128xf32, #tpu.memory_space<vmem>>, %arg4: memref<3x128x128xbf16, #tpu.memory_space<vmem>>, %arg5: memref<1x128xf32, #tpu.memory_space<vmem>>, %arg6: memref<2x8x64xf32, #tpu.memory_space<vmem>>, %arg7: memref<38x64xf32, #tpu.memory_space<vmem>>, %arg8: memref<38x128xf32, #tpu.memory_space<vmem>>, %arg9: memref<36x128xf32, #tpu.memory_space<vmem>>) attributes {dimension_semantics = [#tpu.dimension_semantics<parallel>], iteration_bounds = array<i64: 1>, scalar_prefetch = 0 : i64, scratch_operands = 3 : i64, tpu.core_type = #tpu.core_type<tc>, window_params = [{transform_indices = @transform_0, window_bounds = array<i64: 2, 16, 64>}, {pipeline_mode = #tpu.pipeline_mode<synchronous>, transform_indices = @transform_1, window_bounds = array<i64: 3, 64, 128>}, {pipeline_mode = #tpu.pipeline_mode<synchronous>, transform_indices = @transform_2, window_bounds = array<i64: 1, 128>}, {pipeline_mode = #tpu.pipeline_mode<synchronous>, transform_indices = @transform_3, window_bounds = array<i64: 3, 128, 128>}, {pipeline_mode = #tpu.pipeline_mode<synchronous>, transform_indices = @transform_4, window_bounds = array<i64: 1, 128>}, {transform_indices = @transform_5, window_bounds = array<i64: 2, 8, 64>}]} {
    %c0 = arith.constant 0 : index
    %c0_0 = arith.constant 0 : index
    %c0_1 = arith.constant 0 : index
    %0 = vector.load %arg1[%c0, %c0_0, %c0_1] : memref<2x16x64xf32, #tpu.memory_space<vmem>>, vector<1x16x64xf32>
    %1 = vector.shape_cast %0 : vector<1x16x64xf32> to vector<16x64xf32>
    %c1 = arith.constant 1 : index
    %c0_2 = arith.constant 0 : index
    %2 = vector.load %arg7[%c1, %c0_2] : memref<38x64xf32, #tpu.memory_space<vmem>>, vector<16x64xf32>
    tpu.vector_store %arg7[%c1, %c0_2], %1 {strides = array<i32>} : memref<38x64xf32, #tpu.memory_space<vmem>>, vector<16x64xf32>,
    %c1_3 = arith.constant 1 : index
    %c0_4 = arith.constant 0 : index
    %c0_5 = arith.constant 0 : index
    %3 = vector.load %arg1[%c1_3, %c0_4, %c0_5] : memref<2x16x64xf32, #tpu.memory_space<vmem>>, vector<1x16x64xf32>
    %4 = vector.shape_cast %3 : vector<1x16x64xf32> to vector<16x64xf32>
    %c19 = arith.constant 19 : index
    %c0_6 = arith.constant 0 : index
    %5 = vector.load %arg7[%c19, %c0_6] : memref<38x64xf32, #tpu.memory_space<vmem>>, vector<16x64xf32>
    tpu.vector_store %arg7[%c19, %c0_6], %4 {strides = array<i32>} : memref<38x64xf32, #tpu.memory_space<vmem>>, vector<16x64xf32>,
    %cst = arith.constant 0.000000e+00 : f32
    %6 = vector.broadcast %cst : f32 to vector<1x64xf32>
    %cst_7 = arith.constant 0.000000e+00 : f32
    %7 = vector.broadcast %cst_7 : f32 to vector<2x64xf32>
    %cst_8 = arith.constant 0.000000e+00 : f32
    %8 = vector.broadcast %cst_8 : f32 to vector<3x64xf32>
    %c0_9 = arith.constant 0 : index
    %c0_10 = arith.constant 0 : index
    %9 = vector.load %arg7[%c0_9, %c0_10] : memref<38x64xf32, #tpu.memory_space<vmem>>, vector<1x64xf32>
    tpu.vector_store %arg7[%c0_9, %c0_10], %6 {strides = array<i32>} : memref<38x64xf32, #tpu.memory_space<vmem>>, vector<1x64xf32>,
    %c17 = arith.constant 17 : index
    %c0_11 = arith.constant 0 : index
    %10 = vector.load %arg7[%c17, %c0_11] : memref<38x64xf32, #tpu.memory_space<vmem>>, vector<2x64xf32>
    tpu.vector_store %arg7[%c17, %c0_11], %7 {strides = array<i32>} : memref<38x64xf32, #tpu.memory_space<vmem>>, vector<2x64xf32>,
    %c35 = arith.constant 35 : index
    %c0_12 = arith.constant 0 : index
    %11 = vector.load %arg7[%c35, %c0_12] : memref<38x64xf32, #tpu.memory_space<vmem>>, vector<3x64xf32>
    tpu.vector_store %arg7[%c35, %c0_12], %8 {strides = array<i32>} : memref<38x64xf32, #tpu.memory_space<vmem>>, vector<3x64xf32>,
    %c0_13 = arith.constant 0 : index
    %c0_14 = arith.constant 0 : index
    %12 = vector.load %arg7[%c0_13, %c0_14] : memref<38x64xf32, #tpu.memory_space<vmem>>, vector<36x64xf32>
    %13 = arith.truncf %12 : vector<36x64xf32> to vector<36x64xbf16>
    %c1_15 = arith.constant 1 : index
    %c0_16 = arith.constant 0 : index
    %14 = vector.load %arg7[%c1_15, %c0_16] : memref<38x64xf32, #tpu.memory_space<vmem>>, vector<36x64xf32>
    %15 = arith.truncf %14 : vector<36x64xf32> to vector<36x64xbf16>
    %c2 = arith.constant 2 : index
    %c0_17 = arith.constant 0 : index
    %16 = vector.load %arg7[%c2, %c0_17] : memref<38x64xf32, #tpu.memory_space<vmem>>, vector<36x64xf32>
    %17 = arith.truncf %16 : vector<36x64xf32> to vector<36x64xbf16>
    %c0_18 = arith.constant 0 : index
    %c0_19 = arith.constant 0 : index
    %c0_20 = arith.constant 0 : index
    %18 = vector.load %arg2[%c0_18, %c0_19, %c0_20] : memref<3x64x128xbf16, #tpu.memory_space<vmem>>, vector<1x64x128xbf16>
    %19 = vector.shape_cast %18 : vector<1x64x128xbf16> to vector<64x128xbf16>
    %cst_21 = arith.constant dense<0.000000e+00> : vector<36x128xf32>
    %20 = tpu.matmul %13, %19, %cst_21 {dimension_numbers = #tpu.dot_dimension_numbers<[1], [0], [0], [1], [0, 0, 1, 1], [], []>} : vector<36x64xbf16>, vector<64x128xbf16>, vector<36x128xf32> -> vector<36x128xf32>
    %c1_22 = arith.constant 1 : index
    %c0_23 = arith.constant 0 : index
    %c0_24 = arith.constant 0 : index
    %21 = vector.load %arg2[%c1_22, %c0_23, %c0_24] : memref<3x64x128xbf16, #tpu.memory_space<vmem>>, vector<1x64x128xbf16>
    %22 = vector.shape_cast %21 : vector<1x64x128xbf16> to vector<64x128xbf16>
    %cst_25 = arith.constant dense<0.000000e+00> : vector<36x128xf32>
    %23 = tpu.matmul %15, %22, %cst_25 {dimension_numbers = #tpu.dot_dimension_numbers<[1], [0], [0], [1], [0, 0, 1, 1], [], []>} : vector<36x64xbf16>, vector<64x128xbf16>, vector<36x128xf32> -> vector<36x128xf32>
    %24 = arith.addf %20, %23 : vector<36x128xf32>
    %c2_26 = arith.constant 2 : index
    %c0_27 = arith.constant 0 : index
    %c0_28 = arith.constant 0 : index
    %25 = vector.load %arg2[%c2_26, %c0_27, %c0_28] : memref<3x64x128xbf16, #tpu.memory_space<vmem>>, vector<1x64x128xbf16>
    %26 = vector.shape_cast %25 : vector<1x64x128xbf16> to vector<64x128xbf16>
    %cst_29 = arith.constant dense<0.000000e+00> : vector<36x128xf32>
    %27 = tpu.matmul %17, %26, %cst_29 {dimension_numbers = #tpu.dot_dimension_numbers<[1], [0], [0], [1], [0, 0, 1, 1], [], []>} : vector<36x64xbf16>, vector<64x128xbf16>, vector<36x128xf32> -> vector<36x128xf32>
    %28 = arith.addf %24, %27 : vector<36x128xf32>
    %c0_30 = arith.constant 0 : index
    %c0_31 = arith.constant 0 : index
    %29 = vector.load %arg3[%c0_30, %c0_31] : memref<1x128xf32, #tpu.memory_space<vmem>>, vector<1x128xf32>
    %30 = vector.broadcast %29 : vector<1x128xf32> to vector<36x128xf32>
    %31 = arith.addf %28, %30 : vector<36x128xf32>
    %cst_32 = arith.constant 0.000000e+00 : f32
    %32 = vector.broadcast %cst_32 : f32 to vector<36x128xf32>
    %33 = arith.maximumf %31, %32 : vector<36x128xf32>
    %c1_33 = arith.constant 1 : index
    %c0_34 = arith.constant 0 : index
    %34 = vector.load %arg8[%c1_33, %c0_34] : memref<38x128xf32, #tpu.memory_space<vmem>>, vector<36x128xf32>
    tpu.vector_store %arg8[%c1_33, %c0_34], %33 {strides = array<i32>} : memref<38x128xf32, #tpu.memory_space<vmem>>, vector<36x128xf32>,
    %cst_35 = arith.constant 0.000000e+00 : f32
    %35 = vector.broadcast %cst_35 : f32 to vector<1x128xf32>
    %cst_36 = arith.constant 0.000000e+00 : f32
    %36 = vector.broadcast %cst_36 : f32 to vector<2x128xf32>
    %cst_37 = arith.constant 0.000000e+00 : f32
    %37 = vector.broadcast %cst_37 : f32 to vector<3x128xf32>
    %c0_38 = arith.constant 0 : index
    %c0_39 = arith.constant 0 : index
    %38 = vector.load %arg8[%c0_38, %c0_39] : memref<38x128xf32, #tpu.memory_space<vmem>>, vector<1x128xf32>
    tpu.vector_store %arg8[%c0_38, %c0_39], %35 {strides = array<i32>} : memref<38x128xf32, #tpu.memory_space<vmem>>, vector<1x128xf32>,
    %c17_40 = arith.constant 17 : index
    %c0_41 = arith.constant 0 : index
    %39 = vector.load %arg8[%c17_40, %c0_41] : memref<38x128xf32, #tpu.memory_space<vmem>>, vector<2x128xf32>
    tpu.vector_store %arg8[%c17_40, %c0_41], %36 {strides = array<i32>} : memref<38x128xf32, #tpu.memory_space<vmem>>, vector<2x128xf32>,
    %c35_42 = arith.constant 35 : index
    %c0_43 = arith.constant 0 : index
    %40 = vector.load %arg8[%c35_42, %c0_43] : memref<38x128xf32, #tpu.memory_space<vmem>>, vector<3x128xf32>
    tpu.vector_store %arg8[%c35_42, %c0_43], %37 {strides = array<i32>} : memref<38x128xf32, #tpu.memory_space<vmem>>, vector<3x128xf32>,
    %c0_44 = arith.constant 0 : index
    %c0_45 = arith.constant 0 : index
    %41 = vector.load %arg8[%c0_44, %c0_45] : memref<38x128xf32, #tpu.memory_space<vmem>>, vector<36x128xf32>
    %42 = arith.truncf %41 : vector<36x128xf32> to vector<36x128xbf16>
    %c1_46 = arith.constant 1 : index
    %c0_47 = arith.constant 0 : index
    %43 = vector.load %arg8[%c1_46, %c0_47] : memref<38x128xf32, #tpu.memory_space<vmem>>, vector<36x128xf32>
    %44 = arith.truncf %43 : vector<36x128xf32> to vector<36x128xbf16>
    %c2_48 = arith.constant 2 : index
    %c0_49 = arith.constant 0 : index
    %45 = vector.load %arg8[%c2_48, %c0_49] : memref<38x128xf32, #tpu.memory_space<vmem>>, vector<36x128xf32>
    %46 = arith.truncf %45 : vector<36x128xf32> to vector<36x128xbf16>
    %c0_50 = arith.constant 0 : index
    %c0_51 = arith.constant 0 : index
    %c0_52 = arith.constant 0 : index
    %47 = vector.load %arg4[%c0_50, %c0_51, %c0_52] : memref<3x128x128xbf16, #tpu.memory_space<vmem>>, vector<1x128x128xbf16>
    %48 = vector.shape_cast %47 : vector<1x128x128xbf16> to vector<128x128xbf16>
    %cst_53 = arith.constant dense<0.000000e+00> : vector<36x128xf32>
    %49 = tpu.matmul %42, %48, %cst_53 {dimension_numbers = #tpu.dot_dimension_numbers<[1], [0], [0], [1], [0, 0, 1, 1], [], []>} : vector<36x128xbf16>, vector<128x128xbf16>, vector<36x128xf32> -> vector<36x128xf32>
    %c1_54 = arith.constant 1 : index
    %c0_55 = arith.constant 0 : index
    %c0_56 = arith.constant 0 : index
    %50 = vector.load %arg4[%c1_54, %c0_55, %c0_56] : memref<3x128x128xbf16, #tpu.memory_space<vmem>>, vector<1x128x128xbf16>
    %51 = vector.shape_cast %50 : vector<1x128x128xbf16> to vector<128x128xbf16>
    %cst_57 = arith.constant dense<0.000000e+00> : vector<36x128xf32>
    %52 = tpu.matmul %44, %51, %cst_57 {dimension_numbers = #tpu.dot_dimension_numbers<[1], [0], [0], [1], [0, 0, 1, 1], [], []>} : vector<36x128xbf16>, vector<128x128xbf16>, vector<36x128xf32> -> vector<36x128xf32>
    %53 = arith.addf %49, %52 : vector<36x128xf32>
    %c2_58 = arith.constant 2 : index
    %c0_59 = arith.constant 0 : index
    %c0_60 = arith.constant 0 : index
    %54 = vector.load %arg4[%c2_58, %c0_59, %c0_60] : memref<3x128x128xbf16, #tpu.memory_space<vmem>>, vector<1x128x128xbf16>
    %55 = vector.shape_cast %54 : vector<1x128x128xbf16> to vector<128x128xbf16>
    %cst_61 = arith.constant dense<0.000000e+00> : vector<36x128xf32>
    %56 = tpu.matmul %46, %55, %cst_61 {dimension_numbers = #tpu.dot_dimension_numbers<[1], [0], [0], [1], [0, 0, 1, 1], [], []>} : vector<36x128xbf16>, vector<128x128xbf16>, vector<36x128xf32> -> vector<36x128xf32>
    %57 = arith.addf %53, %56 : vector<36x128xf32>
    %c0_62 = arith.constant 0 : index
    %c0_63 = arith.constant 0 : index
    %58 = vector.load %arg5[%c0_62, %c0_63] : memref<1x128xf32, #tpu.memory_space<vmem>>, vector<1x128xf32>
    %59 = vector.broadcast %58 : vector<1x128xf32> to vector<36x128xf32>
    %60 = arith.addf %57, %59 : vector<36x128xf32>
    %cst_64 = arith.constant 0.000000e+00 : f32
    %61 = vector.broadcast %cst_64 : f32 to vector<36x128xf32>
    %62 = arith.maximumf %60, %61 : vector<36x128xf32>
    %c0_65 = arith.constant 0 : index
    %c0_66 = arith.constant 0 : index
    %63 = vector.load %arg9[%c0_65, %c0_66] : memref<36x128xf32, #tpu.memory_space<vmem>>, vector<36x128xf32>
    tpu.vector_store %arg9[%c0_65, %c0_66], %62 {strides = array<i32>} : memref<36x128xf32, #tpu.memory_space<vmem>>, vector<36x128xf32>,
    %c0_67 = arith.constant 0 : index
    %c0_68 = arith.constant 0 : index
    %64 = tpu.strided_load %arg9[%c0_67, %c0_68] {strides = array<i32: 2, 1>} : memref<36x128xf32, #tpu.memory_space<vmem>>, vector<18x128xf32>
    %c1_69 = arith.constant 1 : index
    %c0_70 = arith.constant 0 : index
    %65 = tpu.strided_load %arg9[%c1_69, %c0_70] {strides = array<i32: 2, 1>} : memref<36x128xf32, #tpu.memory_space<vmem>>, vector<18x128xf32>
    %66 = arith.maximumf %64, %65 : vector<18x128xf32>
    %67 = vector.extract_strided_slice %66 {offsets = [0, 0], sizes = [18, 64], strides = [1, 1]} : vector<18x128xf32> to vector<18x64xf32>
    %68 = vector.extract_strided_slice %66 {offsets = [0, 64], sizes = [18, 64], strides = [1, 1]} : vector<18x128xf32> to vector<18x64xf32>
    %69 = arith.maximumf %67, %68 : vector<18x64xf32>
    %70 = vector.extract_strided_slice %69 {offsets = [0, 0], sizes = [8, 64], strides = [1, 1]} : vector<18x64xf32> to vector<8x64xf32>
    %c0_71 = arith.constant 0 : index
    %c0_72 = arith.constant 0 : index
    %c0_73 = arith.constant 0 : index
    %71 = vector.load %arg6[%c0_71, %c0_72, %c0_73] : memref<2x8x64xf32, #tpu.memory_space<vmem>>, vector<1x8x64xf32>
    %72 = vector.shape_cast %71 : vector<1x8x64xf32> to vector<8x64xf32>
    %73 = vector.shape_cast %70 : vector<8x64xf32> to vector<1x8x64xf32>
    tpu.vector_store %arg6[%c0_71, %c0_72, %c0_73], %73 {strides = array<i32>} : memref<2x8x64xf32, #tpu.memory_space<vmem>>, vector<1x8x64xf32>,
    %74 = vector.extract_strided_slice %69 {offsets = [9, 0], sizes = [8, 64], strides = [1, 1]} : vector<18x64xf32> to vector<8x64xf32>
    %c1_74 = arith.constant 1 : index
    %c0_75 = arith.constant 0 : index
    %c0_76 = arith.constant 0 : index
    %75 = vector.load %arg6[%c1_74, %c0_75, %c0_76] : memref<2x8x64xf32, #tpu.memory_space<vmem>>, vector<1x8x64xf32>
    %76 = vector.shape_cast %75 : vector<1x8x64xf32> to vector<8x64xf32>
    %77 = vector.shape_cast %74 : vector<8x64xf32> to vector<1x8x64xf32>
    tpu.vector_store %arg6[%c1_74, %c0_75, %c0_76], %77 {strides = array<i32>} : memref<2x8x64xf32, #tpu.memory_space<vmem>>, vector<1x8x64xf32>,
    return
  }
  func.func @transform_0(%arg0: i32) -> (i32, i32, i32) {
    %c0_i32 = arith.constant 0 : i32
    %c0_i32_0 = arith.constant 0 : i32
    %c0_i32_1 = arith.constant 0 : i32
    return %arg0, %c0_i32, %c0_i32_0 : i32, i32, i32
  }
  func.func @transform_1(%arg0: i32) -> (i32, i32, i32) {
    %c0_i32 = arith.constant 0 : i32
    %c0_i32_0 = arith.constant 0 : i32
    %c0_i32_1 = arith.constant 0 : i32
    %c0_i32_2 = arith.constant 0 : i32
    return %c0_i32, %c0_i32_0, %c0_i32_1 : i32, i32, i32
  }
  func.func @transform_2(%arg0: i32) -> (i32, i32) {
    %c0_i32 = arith.constant 0 : i32
    %c0_i32_0 = arith.constant 0 : i32
    %c0_i32_1 = arith.constant 0 : i32
    return %c0_i32, %c0_i32_0 : i32, i32
  }
  func.func @transform_3(%arg0: i32) -> (i32, i32, i32) {
    %c0_i32 = arith.constant 0 : i32
    %c0_i32_0 = arith.constant 0 : i32
    %c0_i32_1 = arith.constant 0 : i32
    %c0_i32_2 = arith.constant 0 : i32
    return %c0_i32, %c0_i32_0, %c0_i32_1 : i32, i32, i32
  }
  func.func @transform_4(%arg0: i32) -> (i32, i32) {
    %c0_i32 = arith.constant 0 : i32
    %c0_i32_0 = arith.constant 0 : i32
    %c0_i32_1 = arith.constant 0 : i32
    return %c0_i32, %c0_i32_0 : i32, i32
  }
  func.func @transform_5(%arg0: i32) -> (i32, i32, i32) {
    %c0_i32 = arith.constant 0 : i32
    %c0_i32_0 = arith.constant 0 : i32
    %c0_i32_1 = arith.constant 0 : i32
    return %arg0, %c0_i32, %c0_i32_0 : i32, i32, i32
  }
}

</mosaic_0001>

<llo_original>
// kernel: tile.13
$region0: #{tile.13}
  #allocation0 [shape = 's32[1]{0}', space=sflag, size = 0x4, scoped, tag = 'scoped memory for tile.13']
  %s0 = inlined_call_operand.vmem [shape: f32[8], index: 0, kind: input, shape index: {}]
  %s1 = inlined_call_operand.vmem [shape: f32[16,8], index: 1, kind: output, shape index: {}]
  // Predicated region
  $region2: #{tile.13} parent=0 // pred_check
    _
  $region3: #{tile.13} parent=0 // pred_check_branch
    %3 = sbr.rel (0) target = $region5
  $region4: #{tile.13} parent=0 // pred_region
    _
  $region5: #{tile.13} parent=0 // pred_fallthru
    _
  %v4 = vld [vmem:[%s0] ss:$0 sm:$0xff]
  %5 = vst [vmem:[%s1] sm:$0xff] %v4
  %s6 = scalar_lea.vmem %s1, 8
  %7 = vst [vmem:[%s6] sm:$0xff] %v4

// kernel: tile.14
$region0: #{tile.14}
  %s0 = inlined_call_operand.vmem [shape: f32[16,8], index: 0, kind: input, shape index: {}]
  %s1 = inlined_call_operand.vmem [shape: f32[1,128], index: 1, kind: output, shape index: {}]
  $region1: #{tile.14} parent=0
    #allocation0 [shape = 'u8[4096]{0}', space=vmem, size = 0x1000, scoped, tag = 'scoped mem for output reshape']
    %v2 = vld [vmem:[%s0] sm:$0x1]
    %vm3 = vcmask 64512
    %4 = vst.msk [vmem:[#allocation0] sm:$0x1] %vm3, %v2
    %s5 = scalar_lea.vmem %s0, 15
    %v6 = vld [vmem:[%s5] sm:$0x1]
    %7 = vrot.lane.b32.xlu0 %v6, 120
    %v8 = vpop.permute.xlu0 %7
    %vm9 = vcmask 1048512
    %10 = vst.msk [vmem:[#allocation0] sm:$0x1] %vm9, %v8
    %s11 = scalar_lea.vmem %s0, 14
    %v12 = vld [vmem:[%s11] sm:$0x1]
    %13 = vrot.lane.b32.xlu0 %v12, 112
    %v14 = vpop.permute.xlu0 %13
    %vm15 = vcmask 982912
    %16 = vst.msk [vmem:[#allocation0] sm:$0x1] %vm15, %v14
    %s17 = scalar_lea.vmem %s0, 13
    %v18 = vld [vmem:[%s17] sm:$0x1]
    %19 = vrot.lane.b32.xlu0 %v18, 104
    %v20 = vpop.permute.xlu0 %19
    %vm21 = vcmask 917312
    %22 = vst.msk [vmem:[#allocation0] sm:$0x1] %vm21, %v20
    %s23 = scalar_lea.vmem %s0, 12
    %v24 = vld [vmem:[%s23] sm:$0x1]
    %25 = vrot.lane.b32.xlu0 %v24, 96
    %v26 = vpop.permute.xlu0 %25
    %vm27 = vcmask 851712
    %28 = vst.msk [vmem:[#allocation0] sm:$0x1] %vm27, %v26
    %s29 = scalar_lea.vmem %s0, 11
    %v30 = vld [vmem:[%s29] sm:$0x1]
    %31 = vrot.lane.b32.xlu0 %v30, 88
    %v32 = vpop.permute.xlu0 %31
    %vm33 = vcmask 786112
    %34 = vst.msk [vmem:[#allocation0] sm:$0x1] %vm33, %v32
    %s35 = scalar_lea.vmem %s0, 10
    %v36 = vld [vmem:[%s35] sm:$0x1]
    %37 = vrot.lane.b32.xlu0 %v36, 80
    %v38 = vpop.permute.xlu0 %37
    %vm39 = vcmask 720512
    %40 = vst.msk [vmem:[#allocation0] sm:$0x1] %vm39, %v38
    %s41 = scalar_lea.vmem %s0, 9
    %v42 = vld [vmem:[%s41] sm:$0x1]
    %43 = vrot.lane.b32.xlu0 %v42, 72
    %v44 = vpop.permute.xlu0 %43
    %vm45 = vcmask 654912
    %46 = vst.msk [vmem:[#allocation0] sm:$0x1] %vm45, %v44
    %s47 = scalar_lea.vmem %s0, 8
    %v48 = vld [vmem:[%s47] sm:$0x1]
    %49 = vrot.lane.b32.xlu0 %v48, 64
    %v50 = vpop.permute.xlu0 %49
    %vm51 = vcmask 589312
    %52 = vst.msk [vmem:[#allocation0] sm:$0x1] %vm51, %v50
    %s53 = scalar_lea.vmem %s0, 7
    %v54 = vld [vmem:[%s53] sm:$0x1]
    %55 = vrot.lane.b32.xlu0 %v54, 56
    %v56 = vpop.permute.xlu0 %55
    %vm57 = vcmask 523712
    %58 = vst.msk [vmem:[#allocation0] sm:$0x1] %vm57, %v56
    %s59 = scalar_lea.vmem %s0, 6
    %v60 = vld [vmem:[%s59] sm:$0x1]
    %61 = vrot.lane.b32.xlu0 %v60, 48
    %v62 = vpop.permute.xlu0 %61
    %vm63 = vcmask 458112
    %64 = vst.msk [vmem:[#allocation0] sm:$0x1] %vm63, %v62
    %s65 = scalar_lea.vmem %s0, 5
    %v66 = vld [vmem:[%s65] sm:$0x1]
    %67 = vrot.lane.b32.xlu0 %v66, 40
    %v68 = vpop.permute.xlu0 %67
    %vm69 = vcmask 392512
    %70 = vst.msk [vmem:[#allocation0] sm:$0x1] %vm69, %v68
    %s71 = scalar_lea.vmem %s0, 4
    %v72 = vld [vmem:[%s71] sm:$0x1]
    %73 = vrot.lane.b32.xlu0 %v72, 32
    %v74 = vpop.permute.xlu0 %73
    %vm75 = vcmask 326912
    %76 = vst.msk [vmem:[#allocation0] sm:$0x1] %vm75, %v74
    %s77 = scalar_lea.vmem %s0, 3
    %v78 = vld [vmem:[%s77] sm:$0x1]
    %79 = vrot.lane.b32.xlu0 %v78, 24
    %v80 = vpop.permute.xlu0 %79
    %vm81 = vcmask 261312
    %82 = vst.msk [vmem:[#allocation0] sm:$0x1] %vm81, %v80
    %s83 = scalar_lea.vmem %s0, 2
    %v84 = vld [vmem:[%s83] sm:$0x1]
    %85 = vrot.lane.b32.xlu0 %v84, 16
    %v86 = vpop.permute.xlu0 %85
    %vm87 = vcmask 195712
    %88 = vst.msk [vmem:[#allocation0] sm:$0x1] %vm87, %v86
    %s89 = scalar_lea.vmem %s0, 1
    %v90 = vld [vmem:[%s89] sm:$0x1]
    %91 = vrot.lane.b32.xlu0 %v90, 8
    %v92 = vpop.permute.xlu0 %91
    %vm93 = vcmask 130112
    %94 = vst.msk [vmem:[#allocation0] sm:$0x1] %vm93, %v92
    %s96 = sshll.u32 1, 1
    %s97 = ssub.s32 %s96, 1
    %v99 = vld [vmem:[#allocation0] sm:%s97]
    %s100 = sshll.u32 1, 1
    %s101 = ssub.s32 %s100, 1
    %102 = vst [vmem:[%s1] sm:%s101] %v99

// kernel: block_forward.1
$region0: #{block_forward.1}
  #allocation0 [shape = 'u32[]', space=smem, size = 0x4, offset = 0x4, fixed_abs, tag = 'smem constant byte address 0x4 - core index']
  #allocation1 [shape = 'u32[144,128]{1,0:T(1,128)}', space=vmem, size = 0x12000, scoped, tag = 'internal scratch']
  #allocation2 [shape = 'f32[38,64]{1,0:T(8,128)}', space=vmem, size = 0x5000, scoped, tag = 'scratch operand']
  #allocation3 [shape = 'f32[38,128]{1,0:T(8,128)}', space=vmem, size = 0x5000, scoped, tag = 'scratch operand']
  #allocation4 [shape = 'f32[36,128]{1,0:T(8,128)}', space=vmem, size = 0x5000, scoped, tag = 'scratch operand']
  %s0 = inlined_call_operand.vmem [shape: f32[2,16,64], index: 0, kind: input, shape index: {}]
  %s1 = inlined_call_operand.vmem [shape: bf16[3,64,128], index: 1, kind: input, shape index: {}]
  %s2 = inlined_call_operand.vmem [shape: f32[1,128], index: 2, kind: input, shape index: {}]
  %s3 = inlined_call_operand.vmem [shape: bf16[3,128,128], index: 3, kind: input, shape index: {}]
  %s4 = inlined_call_operand.vmem [shape: f32[1,128], index: 4, kind: input, shape index: {}]
  %s5 = inlined_call_operand.vmem [shape: f32[2,8,64], index: 5, kind: output, shape index: {}]
  %s6 = sld [smem:[#allocation0]]
  $region30: #{block_forward.1} parent=0
    _
  %s8 = ssub.s32 1, %s6
  %s9 = scalar_select 0, %s8, %s6
  // Predicated region
  $region2: #{block_forward.1} parent=0 // pred_check
    _
  $region3: #{block_forward.1} parent=0 // pred_check_branch
    %11 = sbr.rel (0) target = $region5
  $region4: #{block_forward.1} parent=0 // pred_region
    _
  $region5: #{block_forward.1} parent=0 // pred_fallthru
    _
  // Predicated region
  $region6: #{block_forward.1} parent=0 // pred_check
    _
  $region7: #{block_forward.1} parent=0 // pred_check_branch
    %13 = sbr.rel (0) target = $region9
  $region8: #{block_forward.1} parent=0 // pred_region
    _
  $region9: #{block_forward.1} parent=0 // pred_fallthru
    _
  // Predicated region
  $region10: #{block_forward.1} parent=0 // pred_check
    _
  $region11: #{block_forward.1} parent=0 // pred_check_branch
    %15 = sbr.rel (0) target = $region13
  $region12: #{block_forward.1} parent=0 // pred_region
    _
  $region13: #{block_forward.1} parent=0 // pred_fallthru
    _
  // Predicated region
  $region14: #{block_forward.1} parent=0 // pred_check
    _
  $region15: #{block_forward.1} parent=0 // pred_check_branch
    %17 = sbr.rel (0) target = $region17
  $region16: #{block_forward.1} parent=0 // pred_region
    _
  $region17: #{block_forward.1} parent=0 // pred_fallthru
    _
  // Predicated region
  $region18: #{block_forward.1} parent=0 // pred_check
    _
  $region19: #{block_forward.1} parent=0 // pred_check_branch
    %19 = sbr.rel (0) target = $region21
  $region20: #{block_forward.1} parent=0 // pred_region
    _
  $region21: #{block_forward.1} parent=0 // pred_fallthru
    _
  %v21 = vld [vmem:[%s0] sm:$0xff]
  %v22 = vld [vmem:[%s0 + $0x8] sm:$0xff]
  %vm23 = vcmask 523264
  %24 = vst.msk [vmem:[#allocation2 + $0x1] sm:$0xff] %vm23, %v21
  %25 = vst.msk [vmem:[#allocation2 + $0x9] sm:$0xff] %vm23, %v22
  %s26 = scalar_lea.vmem %s0, 16
  %v27 = vld [vmem:[%s26] sm:$0xff]
  %v28 = vld [vmem:[%s26 + $0x8] sm:$0xff]
  %29 = vst.msk [vmem:[#allocation2 + $0x13] sm:$0xff] %vm23, %v27
  %30 = vst.msk [vmem:[#allocation2 + $0x1b] sm:$0xff] %vm23, %v28
  %vm31 = vcmask 516096
  %32 = vst.msk [vmem:[#allocation2] sm:$0x1] %vm31, 0.0
  %vm33 = vcmask 517120
  %34 = vst.msk [vmem:[#allocation2 + $0x11] sm:$0x3] %vm33, 0.0
  %vm35 = vcmask 518144
  %36 = vst.msk [vmem:[#allocation2 + $0x23] sm:$0x7] %vm35, 0.0
  %v37 = vld [vmem:[#allocation2] sm:$0xff]
  %v38 = vld [vmem:[#allocation2 + $0x8] sm:$0xff]
  %v39 = vld [vmem:[#allocation2 + $0x10] sm:$0xff]
  %v40 = vld [vmem:[#allocation2 + $0x18] sm:$0xff]
  %v41 = vld [vmem:[#allocation2 + $0x20] sm:$0xf]
  %v42 = vpack.c.bf16 %v38, %v37
  %v43 = vpack.c.bf16 %v40, %v39
  %v44 = vpack.c.bf16 %v41, %v41
  %v45 = vld [vmem:[#allocation2 + $0x1] sm:$0xff]
  %v46 = vld [vmem:[#allocation2 + $0x9] sm:$0xff]
  %v47 = vld [vmem:[#allocation2 + $0x11] sm:$0xff]
  %v48 = vld [vmem:[#allocation2 + $0x19] sm:$0xff]
  %v49 = vld [vmem:[#allocation2 + $0x21] sm:$0xf]
  %v50 = vpack.c.bf16 %v46, %v45
  %v51 = vpack.c.bf16 %v48, %v47
  %v52 = vpack.c.bf16 %v49, %v49
  %v53 = vld [vmem:[#allocation2 + $0x2] sm:$0xff]
  %v54 = vld [vmem:[#allocation2 + $0xa] sm:$0xff]
  %v55 = vld [vmem:[#allocation2 + $0x12] sm:$0xff]
  %v56 = vld [vmem:[#allocation2 + $0x1a] sm:$0xff]
  %v57 = vld [vmem:[#allocation2 + $0x22] sm:$0xf]
  %v58 = vpack.c.bf16 %v54, %v53
  %v59 = vpack.c.bf16 %v56, %v55
  %v60 = vpack.c.bf16 %v57, %v57
  %v61 = vld [vmem:[%s1] sm:$0xf]
  %v62 = vld [vmem:[%s1 + $0x4] sm:$0xf]
  %v63 = vld [vmem:[%s1 + $0x8] sm:$0xf]
  %v64 = vld [vmem:[%s1 + $0xc] sm:$0xf]
  %v65 = vld [vmem:[%s1 + $0x10] sm:$0xf]
  %v66 = vld [vmem:[%s1 + $0x14] sm:$0xf]
  %v67 = vld [vmem:[%s1 + $0x18] sm:$0xf]
  %v68 = vld [vmem:[%s1 + $0x1c] sm:$0xf]
  %s69 = scalar_lea.vmem %s1, 32
  %v70 = vld [vmem:[%s69] sm:$0xf]
  %v71 = vld [vmem:[%s69 + $0x4] sm:$0xf]
  %v72 = vld [vmem:[%s69 + $0x8] sm:$0xf]
  %v73 = vld [vmem:[%s69 + $0xc] sm:$0xf]
  %v74 = vld [vmem:[%s69 + $0x10] sm:$0xf]
  %v75 = vld [vmem:[%s69 + $0x14] sm:$0xf]
  %v76 = vld [vmem:[%s69 + $0x18] sm:$0xf]
  %v77 = vld [vmem:[%s69 + $0x1c] sm:$0xf]
  %v86 = vunpack.c.l.b16 %v70
  %v87 = vunpack.c.l.b16 %v71
  %v88 = vunpack.c.l.b16 %v72
  %v89 = vunpack.c.l.b16 %v73
  %v90 = vunpack.c.l.b16 %v74
  %v91 = vunpack.c.l.b16 %v75
  %v92 = vunpack.c.l.b16 %v76
  %v93 = vunpack.c.l.b16 %v77
  %v94 = vpack.c.b16 %v87, %v86
  %v95 = vpack.c.b16 %v89, %v88
  %v96 = vpack.c.b16 %v91, %v90
  %v97 = vpack.c.b16 %v93, %v92
  %v103 = vsel %vm23, %v50, 0
  %v106 = vsel %vm23, %v51, 0
  %v109 = vsel %vm23, %v52, 0
  %111 = vmatprep.subr.bf16.mxu0 0
  %112 = vmatpush1.bf16.msra.mxu0 0
  %113 = vmatprep.subr.bf16.mxu0 0
  %114 = vmatpush1.bf16.msra.mxu0 0
  %115 = vmatprep.subr.bf16.mxu0 0
  %116 = vmatpush1.bf16.msra.mxu0 0
  %117 = vmatprep.subr.bf16.mxu0 0
  %118 = vmatpush1.bf16.msra.mxu0 0
  %119 = vmatprep.subr.bf16.mxu0 0
  %120 = vmatpush1.bf16.msra.mxu0 %v97
  %121 = vmatprep.subr.bf16.mxu0 0
  %122 = vmatpush1.bf16.msra.mxu0 %v96
  %123 = vmatprep.subr.bf16.mxu0 0
  %124 = vmatpush1.bf16.msra.mxu0 %v95
  %125 = vmatprep.subr.bf16.mxu0 0
  %126 = vmatpush1.bf16.msra.mxu0 %v94
  %127 = vmatprep.subr.bf16.mxu0 0
  %128 = vmatpush2.bf16.msra.mxu0 0
  %129 = vmatprep.subr.bf16.mxu0 0
  %130 = vmatpush2.bf16.msra.mxu0 0
  %131 = vmatprep.subr.bf16.mxu0 0
  %132 = vmatpush2.bf16.msra.mxu0 0
  %133 = vmatprep.subr.bf16.mxu0 0
  %134 = vmatpush2.bf16.msra.mxu0 0
  %135 = vmatprep.subr.bf16.mxu0 0
  %136 = vmatpush2.bf16.msra.mxu0 0
  %137 = vmatprep.subr.bf16.mxu0 0
  %138 = vmatpush2.bf16.msra.mxu0 0
  %139 = vmatprep.subr.bf16.mxu0 0
  %140 = vmatpush2.bf16.msra.mxu0 0
  %141 = vmatprep.subr.bf16.mxu0 0
  %142 = vmatpush2.bf16.msra.mxu0 0
  %143 = vmatprep.mubr.bf16.mxu0 0
  %144 = vmatmul.mubr.bf16.gmra.mxu0 %v103
  %v145 = vpop.f32.mrf.mxu0
  %v146 = vadd.f32 0.0, %v145
  %v147 = vpop.f32.mrf.mxu0
  %v148 = vpop.f32.mrf.mxu0
  %v149 = vadd.f32 0.0, %v148
  %v150 = vpop.f32.mrf.mxu0
  %151 = vmatprep.mubr.bf16.mxu0 0
  %152 = vmatmul.mubr.bf16.gmra.mxu0 %v106
  %v153 = vpop.f32.mrf.mxu0
  %v154 = vadd.f32 0.0, %v153
  %v155 = vpop.f32.mrf.mxu0
  %v156 = vpop.f32.mrf.mxu0
  %v157 = vadd.f32 0.0, %v156
  %v158 = vpop.f32.mrf.mxu0
  %159 = vmatprep.mubr.bf16.mxu0 0
  %160 = vmatmul.mubr.bf16.gmra.mxu0 %v109
  %v161 = vpop.f32.mrf.mxu0
  %v162 = vadd.f32 0.0, %v161
  %v163 = vpop.f32.mrf.mxu0
  %v164 = vpop.f32.mrf.mxu0
  %v165 = vpop.f32.mrf.mxu0
  %166 = vdwg.mxu0
  %v175 = vunpack.c.l.b16 %v61
  %v176 = vunpack.c.l.b16 %v62
  %v177 = vunpack.c.l.b16 %v63
  %v178 = vunpack.c.l.b16 %v64
  %v179 = vunpack.c.l.b16 %v65
  %v180 = vunpack.c.l.b16 %v66
  %v181 = vunpack.c.l.b16 %v67
  %v182 = vunpack.c.l.b16 %v68
  %v183 = vpack.c.b16 %v176, %v175
  %v184 = vpack.c.b16 %v178, %v177
  %v185 = vpack.c.b16 %v180, %v179
  %v186 = vpack.c.b16 %v182, %v181
  %v192 = vsel %vm23, %v42, 0
  %v195 = vsel %vm23, %v43, 0
  %v198 = vsel %vm23, %v44, 0
  %200 = vmatprep.subr.bf16.mxu0 0
  %201 = vmatpush1.bf16.msra.mxu0 0
  %202 = vmatprep.subr.bf16.mxu0 0
  %203 = vmatpush1.bf16.msra.mxu0 0
  %204 = vmatprep.subr.bf16.mxu0 0
  %205 = vmatpush1.bf16.msra.mxu0 0
  %206 = vmatprep.subr.bf16.mxu0 0
  %207 = vmatpush1.bf16.msra.mxu0 0
  %208 = vmatprep.subr.bf16.mxu0 0
  %209 = vmatpush1.bf16.msra.mxu0 %v186
  %210 = vmatprep.subr.bf16.mxu0 0
  %211 = vmatpush1.bf16.msra.mxu0 %v185
  %212 = vmatprep.subr.bf16.mxu0 0
  %213 = vmatpush1.bf16.msra.mxu0 %v184
  %214 = vmatprep.subr.bf16.mxu0 0
  %215 = vmatpush1.bf16.msra.mxu0 %v183
  %216 = vmatprep.subr.bf16.mxu0 0
  %217 = vmatpush2.bf16.msra.mxu0 0
  %218 = vmatprep.subr.bf16.mxu0 0
  %219 = vmatpush2.bf16.msra.mxu0 0
  %220 = vmatprep.subr.bf16.mxu0 0
  %221 = vmatpush2.bf16.msra.mxu0 0
  %222 = vmatprep.subr.bf16.mxu0 0
  %223 = vmatpush2.bf16.msra.mxu0 0
  %224 = vmatprep.subr.bf16.mxu0 0
  %225 = vmatpush2.bf16.msra.mxu0 0
  %226 = vmatprep.subr.bf16.mxu0 0
  %227 = vmatpush2.bf16.msra.mxu0 0
  %228 = vmatprep.subr.bf16.mxu0 0
  %229 = vmatpush2.bf16.msra.mxu0 0
  %230 = vmatprep.subr.bf16.mxu0 0
  %231 = vmatpush2.bf16.msra.mxu0 0
  %232 = vmatprep.mubr.bf16.mxu0 0
  %233 = vmatmul.mubr.bf16.gmra.mxu0 %v192
  %v234 = vpop.f32.mrf.mxu0
  %v235 = vadd.f32 %v146, %v234
  %v236 = vpop.f32.mrf.mxu0
  %v237 = vpop.f32.mrf.mxu0
  %v238 = vadd.f32 %v149, %v237
  %v239 = vpop.f32.mrf.mxu0
  %240 = vmatprep.mubr.bf16.mxu0 0
  %241 = vmatmul.mubr.bf16.gmra.mxu0 %v195
  %v242 = vpop.f32.mrf.mxu0
  %v243 = vadd.f32 %v154, %v242
  %v244 = vpop.f32.mrf.mxu0
  %v245 = vpop.f32.mrf.mxu0
  %v246 = vadd.f32 %v157, %v245
  %v247 = vpop.f32.mrf.mxu0
  %248 = vmatprep.mubr.bf16.mxu0 0
  %249 = vmatmul.mubr.bf16.gmra.mxu0 %v198
  %v250 = vpop.f32.mrf.mxu0
  %v251 = vadd.f32 %v162, %v250
  %v252 = vpop.f32.mrf.mxu0
  %v253 = vpop.f32.mrf.mxu0
  %v254 = vpop.f32.mrf.mxu0
  %255 = vdwg.mxu0
  %s256 = scalar_lea.vmem %s1, 64
  %v257 = vld [vmem:[%s256] sm:$0xf]
  %v258 = vld [vmem:[%s256 + $0x4] sm:$0xf]
  %v259 = vld [vmem:[%s256 + $0x8] sm:$0xf]
  %v260 = vld [vmem:[%s256 + $0xc] sm:$0xf]
  %v261 = vld [vmem:[%s256 + $0x10] sm:$0xf]
  %v262 = vld [vmem:[%s256 + $0x14] sm:$0xf]
  %v263 = vld [vmem:[%s256 + $0x18] sm:$0xf]
  %v264 = vld [vmem:[%s256 + $0x1c] sm:$0xf]
  %v273 = vunpack.c.l.b16 %v257
  %v274 = vunpack.c.l.b16 %v258
  %v275 = vunpack.c.l.b16 %v259
  %v276 = vunpack.c.l.b16 %v260
  %v277 = vunpack.c.l.b16 %v261
  %v278 = vunpack.c.l.b16 %v262
  %v279 = vunpack.c.l.b16 %v263
  %v280 = vunpack.c.l.b16 %v264
  %v281 = vpack.c.b16 %v274, %v273
  %v282 = vpack.c.b16 %v276, %v275
  %v283 = vpack.c.b16 %v278, %v277
  %v284 = vpack.c.b16 %v280, %v279
  %v290 = vsel %vm23, %v58, 0
  %v293 = vsel %vm23, %v59, 0
  %v296 = vsel %vm23, %v60, 0
  %298 = vmatprep.subr.bf16.mxu0 0
  %299 = vmatpush1.bf16.msra.mxu0 0
  %300 = vmatprep.subr.bf16.mxu0 0
  %301 = vmatpush1.bf16.msra.mxu0 0
  %302 = vmatprep.subr.bf16.mxu0 0
  %303 = vmatpush1.bf16.msra.mxu0 0
  %304 = vmatprep.subr.bf16.mxu0 0
  %305 = vmatpush1.bf16.msra.mxu0 0
  %306 = vmatprep.subr.bf16.mxu0 0
  %307 = vmatpush1.bf16.msra.mxu0 %v284
  %308 = vmatprep.subr.bf16.mxu0 0
  %309 = vmatpush1.bf16.msra.mxu0 %v283
  %310 = vmatprep.subr.bf16.mxu0 0
  %311 = vmatpush1.bf16.msra.mxu0 %v282
  %312 = vmatprep.subr.bf16.mxu0 0
  %313 = vmatpush1.bf16.msra.mxu0 %v281
  %314 = vmatprep.subr.bf16.mxu0 0
  %315 = vmatpush2.bf16.msra.mxu0 0
  %316 = vmatprep.subr.bf16.mxu0 0
  %317 = vmatpush2.bf16.msra.mxu0 0
  %318 = vmatprep.subr.bf16.mxu0 0
  %319 = vmatpush2.bf16.msra.mxu0 0
  %320 = vmatprep.subr.bf16.mxu0 0
  %321 = vmatpush2.bf16.msra.mxu0 0
  %322 = vmatprep.subr.bf16.mxu0 0
  %323 = vmatpush2.bf16.msra.mxu0 0
  %324 = vmatprep.subr.bf16.mxu0 0
  %325 = vmatpush2.bf16.msra.mxu0 0
  %326 = vmatprep.subr.bf16.mxu0 0
  %327 = vmatpush2.bf16.msra.mxu0 0
  %328 = vmatprep.subr.bf16.mxu0 0
  %329 = vmatpush2.bf16.msra.mxu0 0
  %330 = vmatprep.mubr.bf16.mxu0 0
  %331 = vmatmul.mubr.bf16.gmra.mxu0 %v290
  %v332 = vpop.f32.mrf.mxu0
  %v333 = vadd.f32 0.0, %v332
  %v334 = vpop.f32.mrf.mxu0
  %v335 = vpop.f32.mrf.mxu0
  %v336 = vadd.f32 0.0, %v335
  %v337 = vpop.f32.mrf.mxu0
  %338 = vmatprep.mubr.bf16.mxu0 0
  %339 = vmatmul.mubr.bf16.gmra.mxu0 %v293
  %v340 = vpop.f32.mrf.mxu0
  %v341 = vadd.f32 0.0, %v340
  %v342 = vpop.f32.mrf.mxu0
  %v343 = vpop.f32.mrf.mxu0
  %v344 = vadd.f32 0.0, %v343
  %v345 = vpop.f32.mrf.mxu0
  %346 = vmatprep.mubr.bf16.mxu0 0
  %347 = vmatmul.mubr.bf16.gmra.mxu0 %v296
  %v348 = vpop.f32.mrf.mxu0
  %v349 = vadd.f32 0.0, %v348
  %v350 = vpop.f32.mrf.mxu0
  %v351 = vpop.f32.mrf.mxu0
  %v352 = vpop.f32.mrf.mxu0
  %353 = vdwg.mxu0
  %v354 = vadd.f32 %v235, %v333
  %v355 = vadd.f32 %v238, %v336
  %v356 = vadd.f32 %v243, %v341
  %v357 = vadd.f32 %v246, %v344
  %v358 = vadd.f32 %v251, %v349
  %v359 = vld [vmem:[%s2] sm:$0x1]
  %v361 = vlaneseq
  %v362 = vshrl.u32 %v361, 7
  %v363 = vsub.s32 0, %v362
  %v364 = vrot.slane %v359, %v363
  %v366 = vadd.f32 %v354, %v364
  %v367 = vadd.f32 %v355, %v364
  %v368 = vadd.f32 %v356, %v364
  %v369 = vadd.f32 %v357, %v364
  %v370 = vadd.f32 %v358, %v364
  %v371 = vmax.f32 %v366, 0.0
  %v372 = vmax.f32 %v367, 0.0
  %v373 = vmax.f32 %v368, 0.0
  %v374 = vmax.f32 %v369, 0.0
  %v375 = vmax.f32 %v370, 0.0
  %376 = vst [vmem:[#allocation3 + $0x1] sm:$0xff] %v371
  %377 = vst [vmem:[#allocation3 + $0x9] sm:$0xff] %v372
  %378 = vst [vmem:[#allocation3 + $0x11] sm:$0xff] %v373
  %379 = vst [vmem:[#allocation3 + $0x19] sm:$0xff] %v374
  %380 = vst [vmem:[#allocation3 + $0x21] sm:$0xf] %v375
  %381 = vst [vmem:[#allocation3] sm:$0x1] 0.0
  %382 = vst [vmem:[#allocation3 + $0x11] sm:$0x3] 0.0
  %383 = vst [vmem:[#allocation3 + $0x23] sm:$0x7] 0.0
  %v384 = vld [vmem:[#allocation3] sm:$0xff]
  %v385 = vld [vmem:[#allocation3 + $0x8] sm:$0xff]
  %v386 = vld [vmem:[#allocation3 + $0x10] sm:$0xff]
  %v387 = vld [vmem:[#allocation3 + $0x18] sm:$0xff]
  %v388 = vld [vmem:[#allocation3 + $0x20] sm:$0xf]
  %v389 = vpack.c.bf16 %v385, %v384
  %v390 = vpack.c.bf16 %v387, %v386
  %v391 = vpack.c.bf16 %v388, %v388
  %v392 = vld [vmem:[#allocation3 + $0x1] sm:$0xff]
  %v393 = vld [vmem:[#allocation3 + $0x9] sm:$0xff]
  %v394 = vld [vmem:[#allocation3 + $0x11] sm:$0xff]
  %v395 = vld [vmem:[#allocation3 + $0x19] sm:$0xff]
  %v396 = vld [vmem:[#allocation3 + $0x21] sm:$0xf]
  %v397 = vpack.c.bf16 %v393, %v392
  %v398 = vpack.c.bf16 %v395, %v394
  %v399 = vpack.c.bf16 %v396, %v396
  %v400 = vld [vmem:[#allocation3 + $0x2] sm:$0xff]
  %v401 = vld [vmem:[#allocation3 + $0xa] sm:$0xff]
  %v402 = vld [vmem:[#allocation3 + $0x12] sm:$0xff]
  %v403 = vld [vmem:[#allocation3 + $0x1a] sm:$0xff]
  %v404 = vld [vmem:[#allocation3 + $0x22] sm:$0xf]
  %v405 = vpack.c.bf16 %v401, %v400
  %v406 = vpack.c.bf16 %v403, %v402
  %v407 = vpack.c.bf16 %v404, %v404
  %v408 = vld [vmem:[%s3] sm:$0xf]
  %v409 = vld [vmem:[%s3 + $0x4] sm:$0xf]
  %v410 = vld [vmem:[%s3 + $0x8] sm:$0xf]
  %v411 = vld [vmem:[%s3 + $0xc] sm:$0xf]
  %v412 = vld [vmem:[%s3 + $0x10] sm:$0xf]
  %v413 = vld [vmem:[%s3 + $0x14] sm:$0xf]
  %v414 = vld [vmem:[%s3 + $0x18] sm:$0xf]
  %v415 = vld [vmem:[%s3 + $0x1c] sm:$0xf]
  %v416 = vld [vmem:[%s3 + $0x20] sm:$0xf]
  %v417 = vld [vmem:[%s3 + $0x24] sm:$0xf]
  %v418 = vld [vmem:[%s3 + $0x28] sm:$0xf]
  %v419 = vld [vmem:[%s3 + $0x2c] sm:$0xf]
  %v420 = vld [vmem:[%s3 + $0x30] sm:$0xf]
  %v421 = vld [vmem:[%s3 + $0x34] sm:$0xf]
  %v422 = vld [vmem:[%s3 + $0x38] sm:$0xf]
  %v423 = vld [vmem:[%s3 + $0x3c] sm:$0xf]
  %s424 = scalar_lea.vmem %s3, 64
  %v425 = vld [vmem:[%s424] sm:$0xf]
  %v426 = vld [vmem:[%s424 + $0x4] sm:$0xf]
  %v427 = vld [vmem:[%s424 + $0x8] sm:$0xf]
  %v428 = vld [vmem:[%s424 + $0xc] sm:$0xf]
  %v429 = vld [vmem:[%s424 + $0x10] sm:$0xf]
  %v430 = vld [vmem:[%s424 + $0x14] sm:$0xf]
  %v431 = vld [vmem:[%s424 + $0x18] sm:$0xf]
  %v432 = vld [vmem:[%s424 + $0x1c] sm:$0xf]
  %v433 = vld [vmem:[%s424 + $0x20] sm:$0xf]
  %v434 = vld [vmem:[%s424 + $0x24] sm:$0xf]
  %v435 = vld [vmem:[%s424 + $0x28] sm:$0xf]
  %v436 = vld [vmem:[%s424 + $0x2c] sm:$0xf]
  %v437 = vld [vmem:[%s424 + $0x30] sm:$0xf]
  %v438 = vld [vmem:[%s424 + $0x34] sm:$0xf]
  %v439 = vld [vmem:[%s424 + $0x38] sm:$0xf]
  %v440 = vld [vmem:[%s424 + $0x3c] sm:$0xf]
  %v457 = vunpack.c.l.b16 %v425
  %v458 = vunpack.c.l.b16 %v426
  %v459 = vunpack.c.l.b16 %v427
  %v460 = vunpack.c.l.b16 %v428
  %v461 = vunpack.c.l.b16 %v429
  %v462 = vunpack.c.l.b16 %v430
  %v463 = vunpack.c.l.b16 %v431
  %v464 = vunpack.c.l.b16 %v432
  %v465 = vunpack.c.l.b16 %v433
  %v466 = vunpack.c.l.b16 %v434
  %v467 = vunpack.c.l.b16 %v435
  %v468 = vunpack.c.l.b16 %v436
  %v469 = vunpack.c.l.b16 %v437
  %v470 = vunpack.c.l.b16 %v438
  %v471 = vunpack.c.l.b16 %v439
  %v472 = vunpack.c.l.b16 %v440
  %v473 = vpack.c.b16 %v458, %v457
  %v474 = vpack.c.b16 %v460, %v459
  %v475 = vpack.c.b16 %v462, %v461
  %v476 = vpack.c.b16 %v464, %v463
  %v477 = vpack.c.b16 %v466, %v465
  %v478 = vpack.c.b16 %v468, %v467
  %v479 = vpack.c.b16 %v470, %v469
  %v480 = vpack.c.b16 %v472, %v471
  %489 = vmatprep.subr.bf16.mxu0 0
  %490 = vmatpush1.bf16.msra.mxu0 %v480
  %491 = vmatprep.subr.bf16.mxu0 0
  %492 = vmatpush1.bf16.msra.mxu0 %v479
  %493 = vmatprep.subr.bf16.mxu0 0
  %494 = vmatpush1.bf16.msra.mxu0 %v478
  %495 = vmatprep.subr.bf16.mxu0 0
  %496 = vmatpush1.bf16.msra.mxu0 %v477
  %497 = vmatprep.subr.bf16.mxu0 0
  %498 = vmatpush1.bf16.msra.mxu0 %v476
  %499 = vmatprep.subr.bf16.mxu0 0
  %500 = vmatpush1.bf16.msra.mxu0 %v475
  %501 = vmatprep.subr.bf16.mxu0 0
  %502 = vmatpush1.bf16.msra.mxu0 %v474
  %503 = vmatprep.subr.bf16.mxu0 0
  %504 = vmatpush1.bf16.msra.mxu0 %v473
  %505 = vmatprep.subr.bf16.mxu0 0
  %506 = vmatpush2.bf16.msra.mxu0 0
  %507 = vmatprep.subr.bf16.mxu0 0
  %508 = vmatpush2.bf16.msra.mxu0 0
  %509 = vmatprep.subr.bf16.mxu0 0
  %510 = vmatpush2.bf16.msra.mxu0 0
  %511 = vmatprep.subr.bf16.mxu0 0
  %512 = vmatpush2.bf16.msra.mxu0 0
  %513 = vmatprep.subr.bf16.mxu0 0
  %514 = vmatpush2.bf16.msra.mxu0 0
  %515 = vmatprep.subr.bf16.mxu0 0
  %516 = vmatpush2.bf16.msra.mxu0 0
  %517 = vmatprep.subr.bf16.mxu0 0
  %518 = vmatpush2.bf16.msra.mxu0 0
  %519 = vmatprep.subr.bf16.mxu0 0
  %520 = vmatpush2.bf16.msra.mxu0 0
  %521 = vmatprep.mubr.bf16.mxu0 0
  %522 = vmatmul.mubr.bf16.gmra.mxu0 %v397
  %v523 = vpop.f32.mrf.mxu0
  %v524 = vadd.f32 0.0, %v523
  %v525 = vpop.f32.mrf.mxu0
  %v526 = vpop.f32.mrf.mxu0
  %v527 = vadd.f32 0.0, %v526
  %v528 = vpop.f32.mrf.mxu0
  %529 = vmatprep.mubr.bf16.mxu0 0
  %530 = vmatmul.mubr.bf16.gmra.mxu0 %v398
  %v531 = vpop.f32.mrf.mxu0
  %v532 = vadd.f32 0.0, %v531
  %v533 = vpop.f32.mrf.mxu0
  %v534 = vpop.f32.mrf.mxu0
  %v535 = vadd.f32 0.0, %v534
  %v536 = vpop.f32.mrf.mxu0
  %537 = vmatprep.mubr.bf16.mxu0 0
  %538 = vmatmul.mubr.bf16.gmra.mxu0 %v399
  %v539 = vpop.f32.mrf.mxu0
  %v540 = vadd.f32 0.0, %v539
  %v541 = vpop.f32.mrf.mxu0
  %v542 = vpop.f32.mrf.mxu0
  %v543 = vpop.f32.mrf.mxu0
  %544 = vdwg.mxu0
  %v561 = vunpack.c.l.b16 %v408
  %v562 = vunpack.c.l.b16 %v409
  %v563 = vunpack.c.l.b16 %v410
  %v564 = vunpack.c.l.b16 %v411
  %v565 = vunpack.c.l.b16 %v412
  %v566 = vunpack.c.l.b16 %v413
  %v567 = vunpack.c.l.b16 %v414
  %v568 = vunpack.c.l.b16 %v415
  %v569 = vunpack.c.l.b16 %v416
  %v570 = vunpack.c.l.b16 %v417
  %v571 = vunpack.c.l.b16 %v418
  %v572 = vunpack.c.l.b16 %v419
  %v573 = vunpack.c.l.b16 %v420
  %v574 = vunpack.c.l.b16 %v421
  %v575 = vunpack.c.l.b16 %v422
  %v576 = vunpack.c.l.b16 %v423
  %v577 = vpack.c.b16 %v562, %v561
  %v578 = vpack.c.b16 %v564, %v563
  %v579 = vpack.c.b16 %v566, %v565
  %v580 = vpack.c.b16 %v568, %v567
  %v581 = vpack.c.b16 %v570, %v569
  %v582 = vpack.c.b16 %v572, %v571
  %v583 = vpack.c.b16 %v574, %v573
  %v584 = vpack.c.b16 %v576, %v575
  %593 = vmatprep.subr.bf16.mxu0 0
  %594 = vmatpush1.bf16.msra.mxu0 %v584
  %595 = vmatprep.subr.bf16.mxu0 0
  %596 = vmatpush1.bf16.msra.mxu0 %v583
  %597 = vmatprep.subr.bf16.mxu0 0
  %598 = vmatpush1.bf16.msra.mxu0 %v582
  %599 = vmatprep.subr.bf16.mxu0 0
  %600 = vmatpush1.bf16.msra.mxu0 %v581
  %601 = vmatprep.subr.bf16.mxu0 0
  %602 = vmatpush1.bf16.msra.mxu0 %v580
  %603 = vmatprep.subr.bf16.mxu0 0
  %604 = vmatpush1.bf16.msra.mxu0 %v579
  %605 = vmatprep.subr.bf16.mxu0 0
  %606 = vmatpush1.bf16.msra.mxu0 %v578
  %607 = vmatprep.subr.bf16.mxu0 0
  %608 = vmatpush1.bf16.msra.mxu0 %v577
  %609 = vmatprep.subr.bf16.mxu0 0
  %610 = vmatpush2.bf16.msra.mxu0 0
  %611 = vmatprep.subr.bf16.mxu0 0
  %612 = vmatpush2.bf16.msra.mxu0 0
  %613 = vmatprep.subr.bf16.mxu0 0
  %614 = vmatpush2.bf16.msra.mxu0 0
  %615 = vmatprep.subr.bf16.mxu0 0
  %616 = vmatpush2.bf16.msra.mxu0 0
  %617 = vmatprep.subr.bf16.mxu0 0
  %618 = vmatpush2.bf16.msra.mxu0 0
  %619 = vmatprep.subr.bf16.mxu0 0
  %620 = vmatpush2.bf16.msra.mxu0 0
  %621 = vmatprep.subr.bf16.mxu0 0
  %622 = vmatpush2.bf16.msra.mxu0 0
  %623 = vmatprep.subr.bf16.mxu0 0
  %624 = vmatpush2.bf16.msra.mxu0 0
  %625 = vmatprep.mubr.bf16.mxu0 0
  %626 = vmatmul.mubr.bf16.gmra.mxu0 %v389
  %v627 = vpop.f32.mrf.mxu0
  %v628 = vadd.f32 %v524, %v627
  %v629 = vpop.f32.mrf.mxu0
  %v630 = vpop.f32.mrf.mxu0
  %v631 = vadd.f32 %v527, %v630
  %v632 = vpop.f32.mrf.mxu0
  %633 = vmatprep.mubr.bf16.mxu0 0
  %634 = vmatmul.mubr.bf16.gmra.mxu0 %v390
  %v635 = vpop.f32.mrf.mxu0
  %v636 = vadd.f32 %v532, %v635
  %v637 = vpop.f32.mrf.mxu0
  %v638 = vpop.f32.mrf.mxu0
  %v639 = vadd.f32 %v535, %v638
  %v640 = vpop.f32.mrf.mxu0
  %641 = vmatprep.mubr.bf16.mxu0 0
  %642 = vmatmul.mubr.bf16.gmra.mxu0 %v391
  %v643 = vpop.f32.mrf.mxu0
  %v644 = vadd.f32 %v540, %v643
  %v645 = vpop.f32.mrf.mxu0
  %v646 = vpop.f32.mrf.mxu0
  %v647 = vpop.f32.mrf.mxu0
  %648 = vdwg.mxu0
  %s649 = scalar_lea.vmem %s3, 128
  %v650 = vld [vmem:[%s649] sm:$0xf]
  %v651 = vld [vmem:[%s649 + $0x4] sm:$0xf]
  %v652 = vld [vmem:[%s649 + $0x8] sm:$0xf]
  %v653 = vld [vmem:[%s649 + $0xc] sm:$0xf]
  %v654 = vld [vmem:[%s649 + $0x10] sm:$0xf]
  %v655 = vld [vmem:[%s649 + $0x14] sm:$0xf]
  %v656 = vld [vmem:[%s649 + $0x18] sm:$0xf]
  %v657 = vld [vmem:[%s649 + $0x1c] sm:$0xf]
  %v658 = vld [vmem:[%s649 + $0x20] sm:$0xf]
  %v659 = vld [vmem:[%s649 + $0x24] sm:$0xf]
  %v660 = vld [vmem:[%s649 + $0x28] sm:$0xf]
  %v661 = vld [vmem:[%s649 + $0x2c] sm:$0xf]
  %v662 = vld [vmem:[%s649 + $0x30] sm:$0xf]
  %v663 = vld [vmem:[%s649 + $0x34] sm:$0xf]
  %v664 = vld [vmem:[%s649 + $0x38] sm:$0xf]
  %v665 = vld [vmem:[%s649 + $0x3c] sm:$0xf]
  %v682 = vunpack.c.l.b16 %v650
  %v683 = vunpack.c.l.b16 %v651
  %v684 = vunpack.c.l.b16 %v652
  %v685 = vunpack.c.l.b16 %v653
  %v686 = vunpack.c.l.b16 %v654
  %v687 = vunpack.c.l.b16 %v655
  %v688 = vunpack.c.l.b16 %v656
  %v689 = vunpack.c.l.b16 %v657
  %v690 = vunpack.c.l.b16 %v658
  %v691 = vunpack.c.l.b16 %v659
  %v692 = vunpack.c.l.b16 %v660
  %v693 = vunpack.c.l.b16 %v661
  %v694 = vunpack.c.l.b16 %v662
  %v695 = vunpack.c.l.b16 %v663
  %v696 = vunpack.c.l.b16 %v664
  %v697 = vunpack.c.l.b16 %v665
  %v698 = vpack.c.b16 %v683, %v682
  %v699 = vpack.c.b16 %v685, %v684
  %v700 = vpack.c.b16 %v687, %v686
  %v701 = vpack.c.b16 %v689, %v688
  %v702 = vpack.c.b16 %v691, %v690
  %v703 = vpack.c.b16 %v693, %v692
  %v704 = vpack.c.b16 %v695, %v694
  %v705 = vpack.c.b16 %v697, %v696
  %714 = vmatprep.subr.bf16.mxu0 0
  %715 = vmatpush1.bf16.msra.mxu0 %v705
  %716 = vmatprep.subr.bf16.mxu0 0
  %717 = vmatpush1.bf16.msra.mxu0 %v704
  %718 = vmatprep.subr.bf16.mxu0 0
  %719 = vmatpush1.bf16.msra.mxu0 %v703
  %720 = vmatprep.subr.bf16.mxu0 0
  %721 = vmatpush1.bf16.msra.mxu0 %v702
  %722 = vmatprep.subr.bf16.mxu0 0
  %723 = vmatpush1.bf16.msra.mxu0 %v701
  %724 = vmatprep.subr.bf16.mxu0 0
  %725 = vmatpush1.bf16.msra.mxu0 %v700
  %726 = vmatprep.subr.bf16.mxu0 0
  %727 = vmatpush1.bf16.msra.mxu0 %v699
  %728 = vmatprep.subr.bf16.mxu0 0
  %729 = vmatpush1.bf16.msra.mxu0 %v698
  %730 = vmatprep.subr.bf16.mxu0 0
  %731 = vmatpush2.bf16.msra.mxu0 0
  %732 = vmatprep.subr.bf16.mxu0 0
  %733 = vmatpush2.bf16.msra.mxu0 0
  %734 = vmatprep.subr.bf16.mxu0 0
  %735 = vmatpush2.bf16.msra.mxu0 0
  %736 = vmatprep.subr.bf16.mxu0 0
  %737 = vmatpush2.bf16.msra.mxu0 0
  %738 = vmatprep.subr.bf16.mxu0 0
  %739 = vmatpush2.bf16.msra.mxu0 0
  %740 = vmatprep.subr.bf16.mxu0 0
  %741 = vmatpush2.bf16.msra.mxu0 0
  %742 = vmatprep.subr.bf16.mxu0 0
  %743 = vmatpush2.bf16.msra.mxu0 0
  %744 = vmatprep.subr.bf16.mxu0 0
  %745 = vmatpush2.bf16.msra.mxu0 0
  %746 = vmatprep.mubr.bf16.mxu0 0
  %747 = vmatmul.mubr.bf16.gmra.mxu0 %v405
  %v748 = vpop.f32.mrf.mxu0
  %v749 = vadd.f32 0.0, %v748
  %v750 = vpop.f32.mrf.mxu0
  %v751 = vpop.f32.mrf.mxu0
  %v752 = vadd.f32 0.0, %v751
  %v753 = vpop.f32.mrf.mxu0
  %754 = vmatprep.mubr.bf16.mxu0 0
  %755 = vmatmul.mubr.bf16.gmra.mxu0 %v406
  %v756 = vpop.f32.mrf.mxu0
  %v757 = vadd.f32 0.0, %v756
  %v758 = vpop.f32.mrf.mxu0
  %v759 = vpop.f32.mrf.mxu0
  %v760 = vadd.f32 0.0, %v759
  %v761 = vpop.f32.mrf.mxu0
  %762 = vmatprep.mubr.bf16.mxu0 0
  %763 = vmatmul.mubr.bf16.gmra.mxu0 %v407
  %v764 = vpop.f32.mrf.mxu0
  %v765 = vadd.f32 0.0, %v764
  %v766 = vpop.f32.mrf.mxu0
  %v767 = vpop.f32.mrf.mxu0
  %v768 = vpop.f32.mrf.mxu0
  %769 = vdwg.mxu0
  %v770 = vadd.f32 %v628, %v749
  %v771 = vadd.f32 %v631, %v752
  %v772 = vadd.f32 %v636, %v757
  %v773 = vadd.f32 %v639, %v760
  %v774 = vadd.f32 %v644, %v765
  %v775 = vld [vmem:[%s4] sm:$0x1]
  %v777 = vlaneseq
  %v778 = vshrl.u32 %v777, 7
  %v779 = vsub.s32 0, %v778
  %v780 = vrot.slane %v775, %v779
  %v782 = vadd.f32 %v770, %v780
  %v783 = vadd.f32 %v771, %v780
  %v784 = vadd.f32 %v772, %v780
  %v785 = vadd.f32 %v773, %v780
  %v786 = vadd.f32 %v774, %v780
  %v787 = vmax.f32 %v782, 0.0
  %v788 = vmax.f32 %v783, 0.0
  %v789 = vmax.f32 %v784, 0.0
  %v790 = vmax.f32 %v785, 0.0
  %v791 = vmax.f32 %v786, 0.0
  %792 = vst [vmem:[#allocation4] sm:$0xff] %v787
  %793 = vst [vmem:[#allocation4 + $0x8] sm:$0xff] %v788
  %794 = vst [vmem:[#allocation4 + $0x10] sm:$0xff] %v789
  %795 = vst [vmem:[#allocation4 + $0x18] sm:$0xff] %v790
  %796 = vst [vmem:[#allocation4 + $0x20] sm:$0xf] %v791
  %v797 = vld [vmem:[#allocation4] ss:$2 sm:$0xff]
  %s798 = scalar_lea.vmem [#allocation4], 16
  %v799 = vld [vmem:[%s798] ss:$2 sm:$0xff]
  %s800 = scalar_lea.vmem [#allocation4], 32
  %v801 = vld [vmem:[%s800] ss:$2 sm:$0x3]
  %s802 = scalar_lea.vmem [#allocation4], 1
  %v803 = vld [vmem:[%s802] ss:$2 sm:$0xff]
  %s804 = scalar_lea.vmem [#allocation4], 17
  %v805 = vld [vmem:[%s804] ss:$2 sm:$0xff]
  %s806 = scalar_lea.vmem [#allocation4], 33
  %v807 = vld [vmem:[%s806] ss:$2 sm:$0x3]
  %v808 = vmax.f32 %v797, %v803
  %v809 = vmax.f32 %v799, %v805
  %v810 = vmax.f32 %v801, %v807
  %814 = vrot.lane.b32.xlu0 %v808, 64
  %v815 = vpop.permute.xlu0 %814
  %816 = vrot.lane.b32.xlu0 %v809, 64
  %v817 = vpop.permute.xlu0 %816
  %818 = vrot.lane.b32.xlu0 %v810, 64
  %v819 = vpop.permute.xlu0 %818
  %v823 = vmax.f32 %v808, %v815
  %v824 = vmax.f32 %v809, %v817
  %v825 = vmax.f32 %v810, %v819
  %826 = vst.msk [vmem:[%s5] sm:$0xff] %vm23, %v823
  %s827 = scalar_lea.vmem %s5, 8
  %vm828 = vcmask 523265
  %829 = vst.msk [vmem:[%s827 - $0x1] sm:$0xfe] %vm828, %v824
  %830 = vst.msk [vmem:[%s827 + $0x7] sm:$0x1] %vm31, %v825
  // Predicated region
  $region22: #{block_forward.1} parent=0 // pred_check
    _
  $region23: #{block_forward.1} parent=0 // pred_check_branch
    %832 = sbr.rel (0) target = $region25
  $region24: #{block_forward.1} parent=0 // pred_region
    _
  $region25: #{block_forward.1} parent=0 // pred_fallthru
    _
  // Predicated region
  $region26: #{block_forward.1} parent=0 // pred_check
    _
  $region27: #{block_forward.1} parent=0 // pred_check_branch
    %834 = sbr.rel (0) target = $region29
  $region28: #{block_forward.1} parent=0 // pred_region
    _
  $region29: #{block_forward.1} parent=0 // pred_fallthru
    _

</llo_original>
